<compile_context>
chip_gen: v5e
topology: v5e:2x2
jax: 0.10.0
libtpu: 0.0.40
codegen_flags: <defaults>
</compile_context>

<pallas_src>
import jax
import jax.numpy as jnp
from jax.experimental import pallas as pl
from jax.experimental.pallas import tpu as pltpu


def _exo_kernel(x_ref, o_ref):
    x = x_ref[...].astype(jnp.float32)
    # EUP op 1: t = tanh(x/2)  =>  sigmoid(x) = (1 + t) / 2   (exact identity)
    t = jnp.tanh(0.5 * x)
    gate = 0.5 * (1.0 + t)
    # EUP op 2: tanh(x) directly (no reciprocal / Newton refinement on VALU).
    tanh_x = jnp.tanh(x)
    # gate*x + (1 - gate)*tanh(x)  ==  tanh(x) + gate*(x - tanh(x))
    o_ref[...] = (tanh_x + gate * (x - tanh_x)).astype(o_ref.dtype)


def _exo_jnp(x):
    """Plain-JAX epilogue for ragged tails / sub-vreg arrays (same math)."""
    xf = x.astype(jnp.float32)
    t = jnp.tanh(0.5 * xf)
    gate = 0.5 * (1.0 + t)
    tanh_x = jnp.tanh(xf)
    return (tanh_x + gate * (xf - tanh_x)).astype(x.dtype)


def _packed_sublanes(dtype):
    """Packed sublane count per vreg tile: 8 (f32), 16 (bf16/f16), 32 (int8/fp8)."""
    return max(8, 32 // jnp.dtype(dtype).itemsize)


def _pick_lane_cols(n, max_lane_cols, sublane):
    """Largest multiple-of-128 divisor of n (<= max_lane_cols).

    Prefers a choice that leaves >= `sublane` rows so vreg tiles are fully
    packed.  Returns 0 if n has no multiple-of-128 divisor (ragged fallback).
    """
    best_any = 0
    best_deep = 0
    c = 128
    while c <= max_lane_cols:
        if n % c == 0:
            best_any = c
            if (n // c) >= sublane:
                best_deep = c
        c += 128
    return best_deep if best_deep else best_any


def _pick_block_rows(rows, target_rows, sublane):
    """Block rows near the byte target such that:
      * multiple of the dtype's packed sublane count (unmasked vreg tiles),
      * exact divisor of rows when a near-target one exists (no masked last block),
      * <= rows // 2 when rows allows it, so the grid has >= 2 steps (v7x megacore).
    """
    if rows < 2 * sublane:
        return rows                                  # full-extent block, always legal
    target = min(target_rows, rows // 2)
    target = max(sublane, (target // sublane) * sublane)
    best = 0
    d = sublane
    while d <= target:
        if rows % d == 0:
            best = d
        d += sublane
    if best >= max(sublane, target // 2):            # exact divisor close to target
        return best
    return target                                    # partial last block is masked


def exo(x, *, block_bytes=4 * 1024 * 1024, max_lane_cols=2048, donate=False):
    """Apply the Exo activation elementwise to an array of any shape.

    donate=True aliases the output onto the input HBM buffer
    (input_output_aliases={0: 0}); only use when the caller donates x.
    """
    orig_shape = x.shape
    dtype = x.dtype
    n = x.size
    if n == 0:
        return x
    itemsize = jnp.dtype(dtype).itemsize
    sublane = _packed_sublanes(dtype)

    cols = _pick_lane_cols(n, max_lane_cols, sublane)
    if cols == 0:
        # n has no multiple-of-128 divisor: run the lane-aligned bulk through
        # the kernel and handle the (<128 element) ragged tail with a tiny jnp
        # epilogue — no full-array pad / slice passes.
        flat = x.reshape(-1)
        n_bulk = (n // 128) * 128
        if n_bulk == 0:
            return _exo_jnp(flat).reshape(orig_shape)
        head = exo(flat[:n_bulk], block_bytes=block_bytes,
                   max_lane_cols=max_lane_cols)
        tail = _exo_jnp(flat[n_bulk:])
        return jnp.concatenate([head, tail]).reshape(orig_shape)

    rows = n // cols
    slab = x.reshape(rows, cols)                     # metadata-only reshape

    target_rows = max(sublane, block_bytes // (cols * itemsize))
    block_rows = _pick_block_rows(rows, target_rows, sublane)
    grid = (pl.cdiv(rows, block_rows),)

    cost = pl.CostEstimate(
        flops=6 * n,
        transcendentals=2 * n,
        bytes_accessed=2 * n * itemsize,
    )

    out = pl.pallas_call(
        _exo_kernel,
        out_shape=jax.ShapeDtypeStruct((rows, cols), dtype),
        grid_spec=pltpu.PrefetchScalarGridSpec(
            num_scalar_prefetch=0,
            grid=grid,
            in_specs=[pl.BlockSpec((block_rows, cols), lambda i: (i, 0))],
            out_specs=pl.BlockSpec((block_rows, cols), lambda i: (i, 0)),
        ),
        compiler_params=pltpu.CompilerParams(
            dimension_semantics=("parallel",),
            # 4 buffers (2 in + 2 out) of ~4 MiB ≈ 16 MiB + scratch: legal on
            # v5e's 16 MiB default, and < v7x's 64 MiB physical VMEM.
            vmem_limit_bytes=48 * 1024 * 1024,
        ),
        cost_estimate=cost,
        input_output_aliases=({0: 0} if donate else {}),
    )(slab)

    return out.reshape(orig_shape)


def exo_reference(x):
    xf = x.astype(jnp.float32)
    gate = jax.nn.sigmoid(xf)
    return (gate * xf + (1.0 - gate) * jnp.tanh(xf)).astype(x.dtype)


if __name__ == "__main__":
    key = jax.random.PRNGKey(0)
    k0, k1, k2 = jax.random.split(key, 3)

    # Small NCHW-style input consistent with multi-modal feature maps.
    x = jax.random.normal(k0, (2, 4, 16, 16), dtype=jnp.float32)
    y = jax.block_until_ready(exo(x))
    y_ref = exo_reference(x)
    assert y.shape == x.shape and y.dtype == x.dtype
    assert jnp.allclose(y, y_ref, atol=1e-5, rtol=1e-5), "f32 mismatch vs reference"

    # Odd-sized input exercises the pad-free bulk+tail fallback path.
    x2 = jax.random.normal(k1, (7, 33), dtype=jnp.float32)
    y2 = jax.block_until_ready(exo(x2))
    assert y2.shape == x2.shape and y2.dtype == x2.dtype
    assert jnp.allclose(y2, exo_reference(x2), atol=1e-5, rtol=1e-5), "ragged mismatch"

    # bf16 input exercises the dtype-aware (16, 128) sublane rounding.
    x3 = jax.random.normal(k2, (4, 8, 128), dtype=jnp.bfloat16)
    y3 = jax.block_until_ready(exo(x3))
    assert y3.shape == x3.shape and y3.dtype == x3.dtype
    assert jnp.allclose(y3.astype(jnp.float32),
                        exo_reference(x3).astype(jnp.float32),
                        atol=2e-2, rtol=2e-2), "bf16 mismatch vs reference"

    print("KERNEL_OK")
</pallas_src>

<mosaic_0001>
module attributes {stable_mosaic.version = 11 : i64} {
  func.func @_exo_kernel(%arg0: i32, %arg1: memref<8x256xf32, #tpu.memory_space<vmem>>, %arg2: memref<8x256xf32, #tpu.memory_space<vmem>>) attributes {dimension_semantics = [#tpu.dimension_semantics<parallel>], iteration_bounds = array<i64: 1>, scalar_prefetch = 0 : i64, scratch_operands = 0 : i64, tpu.core_type = #tpu.core_type<tc>, window_params = [{transform_indices = @transform_0, window_bounds = array<i64: 8, 256>}, {transform_indices = @transform_1, window_bounds = array<i64: 8, 256>}]} {
    %c0 = arith.constant 0 : index
    %c0_0 = arith.constant 0 : index
    %0 = vector.load %arg1[%c0, %c0_0] : memref<8x256xf32, #tpu.memory_space<vmem>>, vector<8x256xf32>
    %cst = arith.constant 5.000000e-01 : f32
    %1 = vector.broadcast %cst : f32 to vector<8x256xf32>
    %2 = arith.mulf %1, %0 : vector<8x256xf32>
    %3 = math.tanh %2 : vector<8x256xf32>
    %cst_1 = arith.constant 1.000000e+00 : f32
    %4 = vector.broadcast %cst_1 : f32 to vector<8x256xf32>
    %5 = arith.addf %4, %3 : vector<8x256xf32>
    %cst_2 = arith.constant 5.000000e-01 : f32
    %6 = vector.broadcast %cst_2 : f32 to vector<8x256xf32>
    %7 = arith.mulf %6, %5 : vector<8x256xf32>
    %8 = math.tanh %0 : vector<8x256xf32>
    %9 = arith.subf %0, %8 : vector<8x256xf32>
    %10 = arith.mulf %7, %9 : vector<8x256xf32>
    %11 = arith.addf %8, %10 : vector<8x256xf32>
    %c0_3 = arith.constant 0 : index
    %c0_4 = arith.constant 0 : index
    %12 = vector.load %arg2[%c0_3, %c0_4] : memref<8x256xf32, #tpu.memory_space<vmem>>, vector<8x256xf32>
    tpu.vector_store %arg2[%c0_3, %c0_4], %11 {strides = array<i32>} : memref<8x256xf32, #tpu.memory_space<vmem>>, vector<8x256xf32>,
    return
  }
  func.func @transform_0(%arg0: i32) -> (i32, i32) {
    %c0_i32 = arith.constant 0 : i32
    %c0_i32_0 = arith.constant 0 : i32
    return %arg0, %c0_i32 : i32, i32
  }
  func.func @transform_1(%arg0: i32) -> (i32, i32) {
    %c0_i32 = arith.constant 0 : i32
    %c0_i32_0 = arith.constant 0 : i32
    return %arg0, %c0_i32 : i32, i32
  }
}

</mosaic_0001>

<llo_original>
// kernel: tpu_custom_call.1
$region0: #{tpu_custom_call.1}
  #allocation0 [shape = 'u32[]', space=smem, size = 0x4, offset = 0x4, fixed_abs, tag = 'smem constant byte address 0x4 - core index']
  #allocation1 [shape = 'u32[72,128]{1,0:T(1,128)}', space=vmem, size = 0x9000, scoped, tag = 'internal scratch']
  %s0 = inlined_call_operand.hbm [shape: f32[8,256], index: 0, kind: input, shape index: {}]
  %s1 = inlined_call_operand.hbm [shape: f32[8,256], index: 1, kind: output, shape index: {}]
  %s2 = sld [smem:[#allocation0]]
  $region18: #{tpu_custom_call.1} parent=0
    _
  %s4 = ssub.s32 1, %s2
  %s5 = scalar_select 0, %s4, %s2
  $region1: #{tpu_custom_call.1} parent=0
    #allocation2 [shape = 'u8[8192]{0}', space=vmem, size = 0x2000, scoped, tag = 'input window, operand 0, single buffered']
    #allocation3 [shape = 's32[1]{0}', space=sflag, size = 0x4, scoped, tag = 'scoped memory for tpu_custom_call.1']
    #allocation4 [shape = 's32[1]{0}', space=sflag, size = 0x4, scoped, tag = 'scoped memory for tpu_custom_call.1']
    #allocation5 [shape = 'u8[8192]{0}', space=vmem, size = 0x2000, scoped, tag = 'output window, operand 0, single buffered']
    %6 = vsyncpa [#allocation3], 0
    %7 = vsyncpa [#allocation4], 0
    // Predicated region
    $region2: #{tpu_custom_call.1} parent=1 // pred_check
      _
    $region3: #{tpu_custom_call.1} parent=1 // pred_check_branch
      %9 = sbr.rel (0) target = $region5
    $region4: #{tpu_custom_call.1} parent=1 // pred_region
      %11 = vsyncadd [#allocation3], 0
      %s13 = sshll.u32 %s0, 4
      %s14 = int_to_ptr.hbm [resolvable:$true] %s13
      %s15 = sshll.u32 [#allocation2], 4
      %s16 = int_to_ptr.vmem [resolvable:$true] %s15
      %18 = dma.hbm_to_vmem [thread:$0]  %s14, 256, %s16, [#allocation3]
    $region5: #{tpu_custom_call.1} parent=1 // pred_fallthru
      _
    // Predicated region
    $region6: #{tpu_custom_call.1} parent=1 // pred_check
      _
    $region7: #{tpu_custom_call.1} parent=1 // pred_check_branch
      %20 = sbr.rel (0) target = $region9
    $region8: #{tpu_custom_call.1} parent=1 // pred_region
      %22 = dma.done [#allocation3], 256
    $region9: #{tpu_custom_call.1} parent=1 // pred_fallthru
      _
    %v23 = vld [vmem:[#allocation2] sm:$0xff]
    %v24 = vld [vmem:[#allocation2 + $0x8] sm:$0xff]
    %v25 = vmul.f32 %v23, 0.5
    %v26 = vmul.f32 %v24, 0.5
    %v27 = vtanh.pop %v25
    %v28 = vtanh.pop %v26
    %v29 = vadd.f32 %v27, 1.0
    %v30 = vadd.f32 %v28, 1.0
    %v31 = vmul.f32 %v29, 0.5
    %v32 = vmul.f32 %v30, 0.5
    %v33 = vtanh.pop %v23
    %v34 = vtanh.pop %v24
    %v35 = vsub.f32 %v23, %v33
    %v36 = vsub.f32 %v24, %v34
    %v37 = vmul.f32 %v31, %v35
    %v38 = vmul.f32 %v32, %v36
    %v39 = vadd.f32 %v33, %v37
    %v40 = vadd.f32 %v34, %v38
    %41 = vst [vmem:[#allocation5] sm:$0xff] %v39
    %42 = vst [vmem:[#allocation5 + $0x8] sm:$0xff] %v40
    // Predicated region
    $region10: #{tpu_custom_call.1} parent=1 // pred_check
      _
    $region11: #{tpu_custom_call.1} parent=1 // pred_check_branch
      %44 = sbr.rel (0) target = $region13
    $region12: #{tpu_custom_call.1} parent=1 // pred_region
      %46 = vsyncadd [#allocation4], 0
      %s48 = sshll.u32 [#allocation5], 4
      %s49 = int_to_ptr.vmem [resolvable:$true] %s48
      %s50 = sshll.u32 %s1, 4
      %s51 = int_to_ptr.hbm [resolvable:$true] %s50
      %53 = dma.vmem_to_hbm [thread:$0]  %s49, 256, %s51, [#allocation4]
    $region13: #{tpu_custom_call.1} parent=1 // pred_fallthru
      _
    // Predicated region
    $region14: #{tpu_custom_call.1} parent=1 // pred_check
      _
    $region15: #{tpu_custom_call.1} parent=1 // pred_check_branch
      %55 = sbr.rel (0) target = $region17
    $region16: #{tpu_custom_call.1} parent=1 // pred_region
      %57 = dma.done [#allocation4], 256
    $region17: #{tpu_custom_call.1} parent=1 // pred_fallthru
      _
    %58 = vsyncpa [#allocation3], 1
    %59 = vsyncpa [#allocation4], 1

</llo_original>
